<compile_context>
chip_gen: v6e
topology: v6e:2x2x1
jax: 0.10.0
libtpu: 0.0.40
codegen_flags: <defaults>
</compile_context>

<pallas_src>
import functools
import math

import jax
import jax.numpy as jnp
from jax import lax
from jax.experimental import pallas as pl
from jax.experimental.pallas import tpu as pltpu


# ----------------------------------------------------------------------------
# small helpers
# ----------------------------------------------------------------------------
def _ru(x, m):
    return (x + m - 1) // m * m


def _pick_tile(dim, candidates, align):
    """Tile for one padded dimension: full (aligned) block when small, else the
    candidate minimizing padding (preferring the larger tile on ties)."""
    if dim <= max(candidates):
        return _ru(dim, align)
    return min(candidates, key=lambda t: (_ru(dim, t), -t))


def _pick_rows(S, cap):
    """Rows-per-block for the (rows, C) elementwise / reduction kernels.
    Must divide S and be a multiple of 8 (or be S itself = full dim)."""
    if S <= cap:
        return S
    for t in range(min(S, cap), 7, -1):
        if S % t == 0 and t % 8 == 0:
            return t
    # TODO(synk): odd spatial sizes fall back to a single full-S block.
    return S


# ----------------------------------------------------------------------------
# Pallas matmul kernels (dense conv / grouped conv)
# ----------------------------------------------------------------------------
def _mm_kernel(a_ref, b_ref, bias_ref, o_ref, acc_ref, *, act):
    @pl.when(pl.program_id(2) == 0)
    def _():
        acc_ref[...] = jnp.zeros_like(acc_ref)

    acc_ref[...] += jnp.dot(a_ref[...], b_ref[...],
                            preferred_element_type=jnp.float32)

    @pl.when(pl.program_id(2) == pl.num_programs(2) - 1)
    def _():
        y = acc_ref[...] + bias_ref[...]          # bias fused in the epilogue
        if act == "sigmoid":
            y = jax.nn.sigmoid(y)                 # fused activation
        o_ref[...] = y.astype(o_ref.dtype)


def matmul_bias(a, b, bias, act="none"):
    """(M, K) @ (K, N) + bias (+activation). bf16 MXU inputs, f32 accumulate."""
    M, K = a.shape
    _, N = b.shape
    tm = _pick_tile(M, (128, 256), 8)
    tk = _pick_tile(K, (128, 256, 512), 128)
    tn = _pick_tile(N, (128, 256), 128)
    Mp, Kp, Np = _ru(M, tm), _ru(K, tk), _ru(N, tn)
    a = jnp.pad(a.astype(jnp.bfloat16), ((0, Mp - M), (0, Kp - K)))
    b = jnp.pad(b.astype(jnp.bfloat16), ((0, Kp - K), (0, Np - N)))
    bias = jnp.pad(bias.astype(jnp.float32), (0, Np - N)).reshape(1, Np)

    out = pl.pallas_call(
        functools.partial(_mm_kernel, act=act),
        out_shape=jax.ShapeDtypeStruct((Mp, Np), jnp.float32),
        grid_spec=pltpu.PrefetchScalarGridSpec(
            num_scalar_prefetch=0,
            grid=(Mp // tm, Np // tn, Kp // tk),
            in_specs=[
                pl.BlockSpec((tm, tk), lambda i, j, k: (i, k)),
                pl.BlockSpec((tk, tn), lambda i, j, k: (k, j)),
                pl.BlockSpec((1, tn), lambda i, j, k: (0, j)),
            ],
            out_specs=pl.BlockSpec((tm, tn), lambda i, j, k: (i, j)),
            scratch_shapes=[pltpu.VMEM((tm, tn), jnp.float32)],
        ),
        compiler_params=pltpu.CompilerParams(
            dimension_semantics=("parallel", "parallel", "arbitrary"),
            vmem_limit_bytes=64 * 1024 * 1024,
        ),
    )(a, b, bias)
    return out[:M, :N]


def _gmm_kernel(l_ref, r_ref, o_ref, acc_ref):
    @pl.when(pl.program_id(2) == 0)
    def _():
        acc_ref[...] = jnp.zeros_like(acc_ref)

    acc_ref[...] += jnp.dot(l_ref[0], r_ref[0],
                            preferred_element_type=jnp.float32)

    @pl.when(pl.program_id(2) == pl.num_programs(2) - 1)
    def _():
        o_ref[0] = acc_ref[...]


def grouped_matmul(lhs, rhs):
    """(G, Ng, K) @ (G, K, M) -> (G, Ng, M): transposed grouped-conv matmul.
    The tiny per-group output-channel dim Ng sits on sublanes (padded to 8),
    the big voxel dim M fills the 128-lane axis."""
    G, Ng, K = lhs.shape
    _, _, M = rhs.shape
    Ngp = _ru(Ng, 8)
    tk = _pick_tile(K, (128, 256, 512), 128)
    Kp = _ru(K, tk)
    if M <= 512:
        tM, Mp = M, M
    else:
        tM = _pick_tile(M, (128, 256, 512), 128)
        Mp = _ru(M, tM)
    lhs = jnp.pad(lhs.astype(jnp.bfloat16), ((0, 0), (0, Ngp - Ng), (0, Kp - K)))
    rhs = jnp.pad(rhs.astype(jnp.bfloat16), ((0, 0), (0, Kp - K), (0, Mp - M)))

    out = pl.pallas_call(
        _gmm_kernel,
        out_shape=jax.ShapeDtypeStruct((G, Ngp, Mp), jnp.float32),
        grid_spec=pltpu.PrefetchScalarGridSpec(
            num_scalar_prefetch=0,
            grid=(G, Mp // tM, Kp // tk),
            in_specs=[
                pl.BlockSpec((1, Ngp, tk), lambda g, m, k: (g, 0, k)),
                pl.BlockSpec((1, tk, tM), lambda g, m, k: (g, k, m)),
            ],
            out_specs=pl.BlockSpec((1, Ngp, tM), lambda g, m, k: (g, 0, m)),
            scratch_shapes=[pltpu.VMEM((Ngp, tM), jnp.float32)],
        ),
        compiler_params=pltpu.CompilerParams(
            dimension_semantics=("parallel", "parallel", "arbitrary"),
            vmem_limit_bytes=64 * 1024 * 1024,
        ),
    )(lhs, rhs)
    return out[:, :Ng, :M]


# ----------------------------------------------------------------------------
# GroupNorm (two tiled Pallas passes) with fused residual-add + PReLU
# ----------------------------------------------------------------------------
def _gn_stats_kernel(x_ref, s1_ref, s2_ref, a1_ref, a2_ref):
    @pl.when(pl.program_id(1) == 0)
    def _():
        a1_ref[...] = jnp.zeros_like(a1_ref)
        a2_ref[...] = jnp.zeros_like(a2_ref)

    x = x_ref[0]                                   # (ts, C)
    a1_ref[...] += jnp.sum(x, axis=0, keepdims=True)
    a2_ref[...] += jnp.sum(x * x, axis=0, keepdims=True)

    @pl.when(pl.program_id(1) == pl.num_programs(1) - 1)
    def _():
        s1_ref[0] = a1_ref[...]
        s2_ref[0] = a2_ref[...]


def _gn_apply_kernel(*refs, act, has_res):
    if has_res:
        x_ref, sc_ref, sh_ref, r_ref, a_ref, o_ref = refs
    else:
        x_ref, sc_ref, sh_ref, a_ref, o_ref = refs
    y = x_ref[0] * sc_ref[0] + sh_ref[0]           # (ts, C) * (1, C) + (1, C)
    if has_res:
        y = y + r_ref[0]
    if act == "prelu":
        alpha = a_ref[0]                           # scalar from SMEM
        y = jnp.where(y >= 0, y, alpha * y)
    o_ref[0] = y


def group_norm(x, gamma, beta, *, alpha=None, act="none", residual=None,
               num_groups=32, eps=1e-5):
    """GroupNorm (biased variance, eps=1e-5) with optional fused residual add
    and PReLU.  gamma/beta are never broadcast to feature size; only a tiny
    (N, C) scale/shift pair is materialized."""
    N, D, H, W, C = x.shape
    S = D * H * W
    G = num_groups
    Cg = C // G
    xv = x.reshape(N, S, C)
    cap = max(8, min(1024, 65536 // max(C, 1)))    # keep blocks <= ~256 KiB
    ts = _pick_rows(S, cap)
    grid = (N, S // ts)

    s1, s2 = pl.pallas_call(
        _gn_stats_kernel,
        out_shape=(jax.ShapeDtypeStruct((N, 1, C), jnp.float32),
                   jax.ShapeDtypeStruct((N, 1, C), jnp.float32)),
        grid_spec=pltpu.PrefetchScalarGridSpec(
            num_scalar_prefetch=0,
            grid=grid,
            in_specs=[pl.BlockSpec((1, ts, C), lambda n, s: (n, s, 0))],
            out_specs=(pl.BlockSpec((1, 1, C), lambda n, s: (n, 0, 0)),
                       pl.BlockSpec((1, 1, C), lambda n, s: (n, 0, 0))),
            scratch_shapes=[pltpu.VMEM((1, C), jnp.float32),
                            pltpu.VMEM((1, C), jnp.float32)],
        ),
        compiler_params=pltpu.CompilerParams(
            dimension_semantics=("parallel", "arbitrary")),
    )(xv)

    cnt = float(S * Cg)
    gsum = s1.reshape(N, G, Cg).sum(-1)
    gsq = s2.reshape(N, G, Cg).sum(-1)
    mean = gsum / cnt
    var = jnp.maximum(gsq / cnt - mean * mean, 0.0)
    inv = lax.rsqrt(var + eps)                                     # (N, G)
    gam = gamma.reshape(1, C)
    scale = jnp.repeat(inv, Cg, axis=1) * gam                      # (N, C)
    shift = beta.reshape(1, C) - jnp.repeat(mean * inv, Cg, axis=1) * gam
    scale = scale.reshape(N, 1, C)
    shift = shift.reshape(N, 1, C)

    has_res = residual is not None
    alpha_arr = jnp.asarray(alpha if alpha is not None else 0.0,
                            jnp.float32).reshape(1)

    in_arrays = [xv, scale, shift]
    in_specs = [
        pl.BlockSpec((1, ts, C), lambda n, s: (n, s, 0)),
        pl.BlockSpec((1, 1, C), lambda n, s: (n, 0, 0)),
        pl.BlockSpec((1, 1, C), lambda n, s: (n, 0, 0)),
    ]
    if has_res:
        in_arrays.append(residual.reshape(N, S, C))
        in_specs.append(pl.BlockSpec((1, ts, C), lambda n, s: (n, s, 0)))
    in_arrays.append(alpha_arr)
    in_specs.append(pl.BlockSpec(memory_space=pltpu.MemorySpace.SMEM))

    out = pl.pallas_call(
        functools.partial(_gn_apply_kernel, act=act, has_res=has_res),
        out_shape=jax.ShapeDtypeStruct((N, S, C), jnp.float32),
        grid_spec=pltpu.PrefetchScalarGridSpec(
            num_scalar_prefetch=0,
            grid=grid,
            in_specs=in_specs,
            out_specs=pl.BlockSpec((1, ts, C), lambda n, s: (n, s, 0)),
        ),
        compiler_params=pltpu.CompilerParams(
            dimension_semantics=("parallel", "parallel")),
    )(*in_arrays)
    return out.reshape(N, D, H, W, C)


# ----------------------------------------------------------------------------
# Convolutions = channels-last im2col (glue) + Pallas matmul
# ----------------------------------------------------------------------------
def _out_size(i, k, s, p, d):
    return (i + 2 * p - d * (k - 1) - 1) // s + 1


def _conv_taps(x, kshape, stride, padding, dilation, out_spatial):
    """Strided / dilated window slices of the zero-padded NDHWC input (one per
    kernel tap), produced in bf16 to halve the patch-tensor HBM bytes."""
    kd, kh, kw = kshape
    sd, sh, sw = stride
    pd, ph, pw = padding
    dd, dh, dw = dilation
    od, oh, ow = out_spatial
    N = x.shape[0]
    C = x.shape[-1]
    xp = jnp.pad(x, ((0, 0), (pd, pd), (ph, ph), (pw, pw), (0, 0)))
    taps = []
    for i in range(kd):
        for j in range(kh):
            for k in range(kw):
                taps.append(lax.slice(
                    xp,
                    (0, i * dd, j * dh, k * dw, 0),
                    (N, i * dd + (od - 1) * sd + 1,
                     j * dh + (oh - 1) * sh + 1,
                     k * dw + (ow - 1) * sw + 1, C),
                    (1, sd, sh, sw, 1)))
    return taps


def conv3d(x, w, b=None, stride=(1, 1, 1), padding=(0, 0, 0),
           dilation=(1, 1, 1), act="none"):
    """Dense 3-D conv.  x: NDHWC, w: PyTorch (Cout, Cin, kd, kh, kw).
    Channels-last im2col (no relayout) + bf16 Pallas matmul with bias (and
    optional sigmoid) fused into the epilogue."""
    N, D, H, W, Cin = x.shape
    Cout, _, kd, kh, kw = w.shape
    od = _out_size(D, kd, stride[0], padding[0], dilation[0])
    oh = _out_size(H, kh, stride[1], padding[1], dilation[1])
    ow = _out_size(W, kw, stride[2], padding[2], dilation[2])
    M = N * od * oh * ow
    K3 = kd * kh * kw

    taps = _conv_taps(x.astype(jnp.bfloat16), (kd, kh, kw), stride, padding,
                      dilation, (od, oh, ow))
    if K3 == 1:
        a = taps[0].reshape(M, Cin)
    else:
        a = jnp.concatenate(taps, axis=-1).reshape(M, K3 * Cin)
    bmat = jnp.transpose(w, (2, 3, 4, 1, 0)).reshape(K3 * Cin, Cout)
    bias = b if b is not None else jnp.zeros((Cout,), jnp.float32)
    out = matmul_bias(a, bmat, bias, act=act)
    return out.reshape(N, od, oh, ow, Cout)


def conv3d_grouped(x, w, stride=(1, 1, 1), padding=(0, 0, 0),
                   dilation=(1, 1, 1), groups=32):
    """Grouped 3-D conv (bottleneck conv2) via the transposed grouped matmul."""
    N, D, H, W, C = x.shape
    Cout, Cg, kd, kh, kw = w.shape
    G = groups
    Ng = Cout // G
    od = _out_size(D, kd, stride[0], padding[0], dilation[0])
    oh = _out_size(H, kh, stride[1], padding[1], dilation[1])
    ow = _out_size(W, kw, stride[2], padding[2], dilation[2])
    M = N * od * oh * ow
    K3 = kd * kh * kw

    taps = _conv_taps(x.astype(jnp.bfloat16), (kd, kh, kw), stride, padding,
                      dilation, (od, oh, ow))
    taps = [jnp.transpose(t.reshape(M, G, Cg), (1, 2, 0)) for t in taps]
    rhs = jnp.stack(taps, axis=1).reshape(G, K3 * Cg, M)   # K order = (tap, cg)
    lhs = jnp.transpose(w.reshape(G, Ng, Cg, K3),
                        (0, 1, 3, 2)).reshape(G, Ng, K3 * Cg)
    out = grouped_matmul(lhs, rhs)                          # (G, Ng, M)
    return jnp.transpose(out, (2, 0, 1)).reshape(N, od, oh, ow, Cout)


# ----------------------------------------------------------------------------
# Trilinear interpolation (align_corners=False) and max-pool  (plain JAX glue)
# ----------------------------------------------------------------------------
def _lin_interp_axis(x, axis, out_sz):
    in_sz = x.shape[axis]
    if out_sz == in_sz:
        return x
    scale = in_sz / out_sz
    coords = (jnp.arange(out_sz, dtype=jnp.float32) + 0.5) * scale - 0.5
    coords = jnp.clip(coords, 0.0, in_sz - 1)
    lo = jnp.floor(coords).astype(jnp.int32)
    hi = jnp.minimum(lo + 1, in_sz - 1)
    wgt = coords - lo.astype(jnp.float32)
    xlo = jnp.take(x, lo, axis=axis)
    xhi = jnp.take(x, hi, axis=axis)
    shape = [1] * x.ndim
    shape[axis] = out_sz
    wgt = wgt.reshape(shape)
    return xlo * (1.0 - wgt) + xhi * wgt


def trilinear_resize(x, size):
    # TODO(synk): gather-based trilinear kept in plain JAX (small, not hot path).
    for ax, s in zip((1, 2, 3), size):
        x = _lin_interp_axis(x, ax, int(s))
    return x


def maxpool3d(x):
    # TODO(synk): maxpool kept as lax.reduce_window (small, not the hot path).
    return lax.reduce_window(
        x, -jnp.inf, lax.max, (1, 3, 3, 3, 1), (1, 2, 2, 2, 1),
        ((0, 0), (1, 1), (1, 1), (1, 1), (0, 0)))


# ----------------------------------------------------------------------------
# Parameter initialization (deterministic, synthetic, PyTorch weight layout)
# ----------------------------------------------------------------------------
class KeyGen:
    def __init__(self, key):
        self.key = key
        self.n = 0

    def __call__(self):
        self.n += 1
        return jax.random.fold_in(self.key, self.n)


def _conv_w(key, cout, cin_g, k):
    fan_in = cin_g * math.prod(k)
    return jax.random.normal(key, (cout, cin_g) + tuple(k), jnp.float32) * math.sqrt(
        2.0 / fan_in)


def _bias(key, c):
    return jax.random.normal(key, (c,), jnp.float32) * 0.01


def _gn_p(c):
    return (jnp.ones((c,), jnp.float32), jnp.zeros((c,), jnp.float32))


def _conv_block_p(kg, cin, cout, k, norm=True, act=True):
    p = {"w": _conv_w(kg(), cout, cin, (k, k, k)), "b": _bias(kg(), cout)}
    if norm:
        p["gn"] = _gn_p(cout)
    if act:
        p["alpha"] = jnp.array(0.25, jnp.float32)
    return p


def init_daf3d(key, in_channels, out_channels):
    kg = KeyGen(key)
    P = {}

    # --- backbone (Daf3dResNet, layers [3,4,6,3], inplanes [128,256,512,1024])
    bb = {
        "conv1_w": _conv_w(kg(), 64, in_channels, (7, 7, 7)),
        "gn1": _gn_p(64),
        "alpha1": jnp.array(0.25, jnp.float32),
    }

    def mk_block(inp, planes, stride, dil, ds):
        b = {
            "conv1_w": _conv_w(kg(), planes, inp, (1, 1, 1)),
            "gn1": _gn_p(planes),
            "conv2_w": _conv_w(kg(), planes, planes // 32, (3, 3, 3)),
            "gn2": _gn_p(planes),
            "conv3_w": _conv_w(kg(), planes * 2, planes, (1, 1, 1)),
            "gn3": _gn_p(planes * 2),
            "alpha": jnp.array(0.25, jnp.float32),
            "stride": stride,
            "dilation": dil,
        }
        if ds:
            b["ds_w"] = _conv_w(kg(), planes * 2, inp, (1, 1, 1))
            b["ds_gn"] = _gn_p(planes * 2)
        return b

    def mk_layer(inp, planes, n, stride, dil):
        ds = (stride != (1, 1, 1)) or (inp != planes * 2)
        blocks = [mk_block(inp, planes, stride, dil, ds)]
        inp = planes * 2
        for _ in range(n - 1):
            blocks.append(mk_block(inp, planes, (1, 1, 1), dil, False))
        return blocks, inp

    inp = 64
    bb["layer1"], inp = mk_layer(inp, 128, 3, (1, 1, 1), 1)
    bb["layer2"], inp = mk_layer(inp, 256, 4, (1, 2, 2), 1)
    bb["layer3"], inp = mk_layer(inp, 512, 6, (1, 1, 1), 2)
    bb["layer4"], inp = mk_layer(inp, 1024, 3, (1, 1, 1), 2)
    P["backbone"] = bb

    # --- FPN inner blocks (1x1, GroupNorm(32,128)+PReLU)
    P["fpn"] = [_conv_block_p(kg, c, 128, 1) for c in (256, 512, 1024, 2048)]

    # --- fuse
    P["fuse"] = [
        _conv_block_p(kg, 512, 64, 1),
        _conv_block_p(kg, 64, 64, 3),
        _conv_block_p(kg, 64, 64, 3),
    ]

    # --- attention module (shared across the 4 SLFs)
    P["att"] = {
        "am1": _conv_block_p(kg, 192, 64, 1),
        "am2": _conv_block_p(kg, 64, 64, 3),
        "am3": _conv_block_p(kg, 64, 64, 3, norm=False, act=False),  # conv+sigmoid
        "rf1": _conv_block_p(kg, 192, 64, 1),
        "rf2": _conv_block_p(kg, 64, 64, 3),
        "rf3": _conv_block_p(kg, 64, 64, 3),
    }

    # --- refine / predict2 / aspp
    P["refine"] = _conv_block_p(kg, 256, 64, 1)
    P["predict2_w"] = _conv_w(kg(), out_channels, 64, (1, 1, 1))
    P["predict2_b"] = _bias(kg(), out_channels)
    P["aspp"] = {
        "convs": [
            {"w": _conv_w(kg(), 64, 64, (3, 3, 3)), "b": _bias(kg(), 64),
             "gn": _gn_p(64)}
            for _ in range(4)
        ],
        "k1": {"w": _conv_w(kg(), 64, 256, (1, 1, 1)), "b": _bias(kg(), 64),
               "gn": _gn_p(64)},
    }
    return P


# ----------------------------------------------------------------------------
# Forward pass (all features channels-last NDHWC)
# ----------------------------------------------------------------------------
def bottleneck_fwd(p, x):
    stride = p["stride"]
    dil = p["dilation"]
    pad = dil  # padding=1 for normal, padding=2 for dilated bottleneck
    out = conv3d(x, p["conv1_w"])
    out = group_norm(out, *p["gn1"], alpha=p["alpha"], act="prelu")
    out = conv3d_grouped(out, p["conv2_w"], stride=stride,
                         padding=(pad, pad, pad), dilation=(dil, dil, dil))
    out = group_norm(out, *p["gn2"], alpha=p["alpha"], act="prelu")
    out = conv3d(out, p["conv3_w"])
    if "ds_w" in p:
        residual = conv3d(x, p["ds_w"], stride=stride)
        residual = group_norm(residual, *p["ds_gn"])
    else:
        residual = x
    # bn3 + residual add + PReLU fused into a single Pallas pass.
    return group_norm(out, *p["gn3"], alpha=p["alpha"], act="prelu",
                      residual=residual)


def conv_block_fwd(p, x, padding=0):
    """MONAI Convolution, adn 'NA': conv(+bias) -> GroupNorm -> PReLU."""
    out = conv3d(x, p["w"], p["b"], padding=(padding,) * 3)
    return group_norm(out, p["gn"][0], p["gn"][1], alpha=p["alpha"], act="prelu")


def backbone_fwd(P, x):
    x = conv3d(x, P["conv1_w"], stride=(1, 2, 2), padding=(3, 3, 3))
    x = group_norm(x, *P["gn1"], alpha=P["alpha1"], act="prelu")
    x = maxpool3d(x)
    feats = []
    for name in ("layer1", "layer2", "layer3", "layer4"):
        for p in P[name]:
            x = bottleneck_fwd(p, x)
        feats.append(x)
    return feats


def fpn_fwd(P, feats):
    inners = [conv_block_fwd(P[i], f) for i, f in enumerate(feats)]
    last = inners[-1]
    results = [last]
    for idx in range(len(feats) - 2, -1, -1):
        lateral = inners[idx]
        top_down = trilinear_resize(last, lateral.shape[1:4])
        last = lateral + top_down
        results.insert(0, last)
    target = feats[0].shape[1:4]
    return [results[0]] + [trilinear_resize(r, target) for r in results[1:]]


def attention_fwd(P, slf, mlf):
    # TODO(synk): the concat + 1x1-conv pairs could avoid the materialized cat
    # by splitting the matmul K axis per source and accumulating in-place.
    x = jnp.concatenate([slf, mlf], axis=-1)
    a = conv_block_fwd(P["am1"], x)
    a = conv_block_fwd(P["am2"], a, padding=1)
    att = conv3d(a, P["am3"]["w"], P["am3"]["b"], padding=(1, 1, 1),
                 act="sigmoid")                         # conv + sigmoid fused
    y = jnp.concatenate([slf, att * mlf], axis=-1)
    r = conv_block_fwd(P["rf1"], y)
    r = conv_block_fwd(P["rf2"], r, padding=1)
    r = conv_block_fwd(P["rf3"], r, padding=1)
    return r, att


def aspp_fwd(P, x):
    dils = [(1, 1, 1), (1, 6, 6), (1, 12, 12), (1, 18, 18)]
    outs = []
    for cp, d in zip(P["convs"], dils):
        y = conv3d(x, cp["w"], cp["b"], padding=d, dilation=d)
        outs.append(group_norm(y, *cp["gn"]))           # ADN ordering 'N'
    cat = jnp.concatenate(outs, axis=-1)
    y = conv3d(cat, P["k1"]["w"], P["k1"]["b"])
    return group_norm(y, *P["k1"]["gn"])                # conv_k1: norm only


def daf3d_forward(P, x):
    """Eval-mode DAF3D forward: interpolate(predict2(aspp(...)), x spatial)."""
    in_spatial = x.shape[2:]
    x = jnp.transpose(x, (0, 2, 3, 4, 1))               # NCDHW -> NDHWC
    feats = backbone_fwd(P["backbone"], x)
    slfs = fpn_fwd(P["fpn"], feats)

    mlf = conv_block_fwd(P["fuse"][0], jnp.concatenate(slfs, axis=-1))
    mlf = conv_block_fwd(P["fuse"][1], mlf, padding=1)
    mlf = conv_block_fwd(P["fuse"][2], mlf, padding=1)

    att_feats = [attention_fwd(P["att"], slf, mlf)[0] for slf in slfs]

    attentive_mlf = conv_block_fwd(P["refine"],
                                   jnp.concatenate(att_feats, axis=-1))
    aspp = aspp_fwd(P["aspp"], attentive_mlf)
    supervised_final = conv3d(aspp, P["predict2_w"], P["predict2_b"])
    out = trilinear_resize(supervised_final, in_spatial)
    return jnp.transpose(out, (0, 4, 1, 2, 3))          # back to NCDHW


# ----------------------------------------------------------------------------
if __name__ == "__main__":
    in_channels, out_channels = 4, 2
    key = jax.random.PRNGKey(0)
    x = jax.random.normal(jax.random.fold_in(key, 12345),
                          (2, in_channels, 4, 16, 16), jnp.float32)

    params = init_daf3d(key, in_channels, out_channels)
    out = daf3d_forward(params, x)
    out = jax.block_until_ready(out)
    assert out.shape == (2, out_channels, 4, 16, 16), out.shape
    assert bool(jnp.all(jnp.isfinite(out)))
    print("KERNEL_OK")
</pallas_src>

<mosaic_0001>
module attributes {stable_mosaic.version = 11 : i64} {
  func.func @_mm_kernel(%arg0: i32, %arg1: i32, %arg2: i32, %arg3: memref<256x128xbf16, #tpu.memory_space<vmem>>, %arg4: memref<128x128xbf16, #tpu.memory_space<vmem>>, %arg5: memref<1x128xf32, #tpu.memory_space<vmem>>, %arg6: memref<256x128xf32, #tpu.memory_space<vmem>>, %arg7: memref<256x128xf32, #tpu.memory_space<vmem>>) attributes {dimension_semantics = [#tpu.dimension_semantics<parallel>, #tpu.dimension_semantics<parallel>, #tpu.dimension_semantics<arbitrary>], iteration_bounds = array<i64: 2, 1, 11>, scalar_prefetch = 0 : i64, scratch_operands = 1 : i64, tpu.core_type = #tpu.core_type<tc>, window_params = [{transform_indices = @transform_0, window_bounds = array<i64: 256, 128>}, {transform_indices = @transform_1, window_bounds = array<i64: 128, 128>}, {transform_indices = @transform_2, window_bounds = array<i64: 1, 128>}, {transform_indices = @transform_3, window_bounds = array<i64: 256, 128>}]} {
    %c0_i32 = arith.constant 0 : i32
    %0 = arith.cmpi eq, %arg2, %c0_i32 : i32
    %1 = arith.extui %0 : i1 to i32
    %c0_i32_0 = arith.constant 0 : i32
    %2 = arith.cmpi ne, %1, %c0_i32_0 : i32
    scf.if %2 {
      %cst_9 = arith.constant 0.000000e+00 : f32
      %12 = vector.broadcast %cst_9 : f32 to vector<256x128xf32>
      %c0_10 = arith.constant 0 : index
      %c0_11 = arith.constant 0 : index
      %13 = vector.load %arg7[%c0_10, %c0_11] : memref<256x128xf32, #tpu.memory_space<vmem>>, vector<256x128xf32>
      tpu.vector_store %arg7[%c0_10, %c0_11], %12 {strides = array<i32>} : memref<256x128xf32, #tpu.memory_space<vmem>>, vector<256x128xf32>,
    } else {
    }
    %c0 = arith.constant 0 : index
    %c0_1 = arith.constant 0 : index
    %3 = vector.load %arg7[%c0, %c0_1] : memref<256x128xf32, #tpu.memory_space<vmem>>, vector<256x128xf32>
    %c0_2 = arith.constant 0 : index
    %c0_3 = arith.constant 0 : index
    %4 = vector.load %arg3[%c0_2, %c0_3] : memref<256x128xbf16, #tpu.memory_space<vmem>>, vector<256x128xbf16>
    %c0_4 = arith.constant 0 : index
    %c0_5 = arith.constant 0 : index
    %5 = vector.load %arg4[%c0_4, %c0_5] : memref<128x128xbf16, #tpu.memory_space<vmem>>, vector<128x128xbf16>
    %cst = arith.constant dense<0.000000e+00> : vector<256x128xf32>
    %6 = tpu.matmul %4, %5, %cst {dimension_numbers = #tpu.dot_dimension_numbers<[1], [0], [0], [1], [0, 0, 1, 1], [], []>} : vector<256x128xbf16>, vector<128x128xbf16>, vector<256x128xf32> -> vector<256x128xf32>
    %7 = arith.addf %3, %6 : vector<256x128xf32>
    %c0_6 = arith.constant 0 : index
    %c0_7 = arith.constant 0 : index
    %8 = vector.load %arg7[%c0_6, %c0_7] : memref<256x128xf32, #tpu.memory_space<vmem>>, vector<256x128xf32>
    tpu.vector_store %arg7[%c0_6, %c0_7], %7 {strides = array<i32>} : memref<256x128xf32, #tpu.memory_space<vmem>>, vector<256x128xf32>,
    %c10_i32 = arith.constant 10 : i32
    %9 = arith.cmpi eq, %arg2, %c10_i32 : i32
    %10 = arith.extui %9 : i1 to i32
    %c0_i32_8 = arith.constant 0 : i32
    %11 = arith.cmpi ne, %10, %c0_i32_8 : i32
    scf.if %11 {
      %c0_9 = arith.constant 0 : index
      %c0_10 = arith.constant 0 : index
      %12 = vector.load %arg7[%c0_9, %c0_10] : memref<256x128xf32, #tpu.memory_space<vmem>>, vector<256x128xf32>
      %c0_11 = arith.constant 0 : index
      %c0_12 = arith.constant 0 : index
      %13 = vector.load %arg5[%c0_11, %c0_12] : memref<1x128xf32, #tpu.memory_space<vmem>>, vector<1x128xf32>
      %14 = vector.broadcast %13 : vector<1x128xf32> to vector<256x128xf32>
      %15 = arith.addf %12, %14 : vector<256x128xf32>
      %c0_13 = arith.constant 0 : index
      %c0_14 = arith.constant 0 : index
      %16 = vector.load %arg6[%c0_13, %c0_14] : memref<256x128xf32, #tpu.memory_space<vmem>>, vector<256x128xf32>
      tpu.vector_store %arg6[%c0_13, %c0_14], %15 {strides = array<i32>} : memref<256x128xf32, #tpu.memory_space<vmem>>, vector<256x128xf32>,
    } else {
    }
    return
  }
  func.func @transform_0(%arg0: i32, %arg1: i32, %arg2: i32) -> (i32, i32) {
    %c0_i32 = arith.constant 0 : i32
    return %arg0, %arg2 : i32, i32
  }
  func.func @transform_1(%arg0: i32, %arg1: i32, %arg2: i32) -> (i32, i32) {
    %c0_i32 = arith.constant 0 : i32
    return %arg2, %arg1 : i32, i32
  }
  func.func @transform_2(%arg0: i32, %arg1: i32, %arg2: i32) -> (i32, i32) {
    %c0_i32 = arith.constant 0 : i32
    %c0_i32_0 = arith.constant 0 : i32
    return %c0_i32, %arg1 : i32, i32
  }
  func.func @transform_3(%arg0: i32, %arg1: i32, %arg2: i32) -> (i32, i32) {
    %c0_i32 = arith.constant 0 : i32
    return %arg0, %arg1 : i32, i32
  }
}

</mosaic_0001>

<llo_original>
// kernel: tpu_custom_call.1
$region0: #{tpu_custom_call.1}
  #allocation0 [shape = 'u32[]', space=smem, size = 0x4, offset = 0x4, fixed_abs, tag = 'smem constant byte address 0x4 - core index']
  #allocation1 [shape = 'u32[144,128]{1,0:T(1,128)}', space=vmem, size = 0x12000, scoped, tag = 'internal scratch']
  #allocation2 [shape = 'f32[256,128]{1,0:T(8,128)}', space=vmem, size = 0x20000, scoped, tag = 'scratch operand']
  %s0 = inlined_call_operand.hbm [shape: bf16[512,1408], index: 0, kind: input, shape index: {}]
  %s1 = inlined_call_operand.hbm [shape: bf16[1408,128], index: 1, kind: input, shape index: {}]
  %s2 = inlined_call_operand.hbm [shape: f32[1,128], index: 2, kind: input, shape index: {}]
  %s3 = inlined_call_operand.hbm [shape: f32[512,128], index: 3, kind: output, shape index: {}]
  %s4 = sld [smem:[#allocation0]]
  $region65: #{tpu_custom_call.1} parent=0
    _
  %s6 = ssub.s32 1, %s4
  %s7 = scalar_select 0, %s6, %s4
  $region1: #{tpu_custom_call.1} parent=0
    #allocation3 [shape = 'u8[131072]{0}', space=vmem, size = 0x20000, scoped, tag = 'input window, operand 0']
    #allocation4 [shape = 's32[2]{0}', space=sflag, size = 0x8, scoped, tag = 'scoped memory for tpu_custom_call.1']
    #allocation5 [shape = 's32[2]{0}', space=sflag, size = 0x8, scoped, tag = 'scoped memory for tpu_custom_call.1']
    #allocation6 [shape = 'u8[65536]{0}', space=vmem, size = 0x10000, scoped, tag = 'input window, operand 1']
    #allocation7 [shape = 's32[2]{0}', space=sflag, size = 0x8, scoped, tag = 'scoped memory for tpu_custom_call.1']
    #allocation8 [shape = 'u8[512]{0}', space=vmem, size = 0x400, scoped, tag = 'input window, operand 2, single buffered']
    #allocation9 [shape = 'u8[262144]{0}', space=vmem, size = 0x40000, scoped, tag = 'output window, operand 0']
    %8 = vsyncpa [#allocation4], 0
    %s9 = scalar_lea.sflag [#allocation4], 1
    %10 = vsyncpa %s9, 0
    %11 = vsyncpa [#allocation7], 0
    %s12 = scalar_lea.sflag [#allocation7], 1
    %13 = vsyncpa %s12, 0
    %14 = vsyncpa [#allocation5], 0
    %s15 = scalar_lea.sflag [#allocation5], 1
    %16 = vsyncpa %s15, 0
    loop: start=0, step=1, limit=24
    $region2: #{tpu_custom_call.1} parent=1 // loop_pre_header
      _
    $region3: #{tpu_custom_call.1} parent=1 // loop_header
      %s18 = sphi 0, %s22
      %p19 = scmp.ge.s32.totalorder %s18, 24
      %s25 = sphi 0, %s44
      %s26 = sphi 0, %s40
      %s27 = sphi 0, %s36
      %s28 = sphi 0, %s25
      %s29 = sphi 0, %s26
      %s30 = sphi 0, %s27
      %s31 = sphi 0, %s28
      %s32 = sphi 0, %s29
      %s33 = sphi 0, %s30
      %s49 = sphi 0, %s51
      %s52 = sphi 0, %s49
      %s53 = sphi 0, %s52
      %s69 = sphi 0, %s53
      %s77 = sphi 0, %s79
      %s80 = sphi 0, %s77
      %s81 = sphi 0, %s80
      %s97 = sphi 0, %s81
      %s103 = sphi 0, %s105
      %s106 = sphi 0, %s103
      %s107 = sphi 0, %s106
      %s123 = sphi 0, %s107
      %s131 = sphi 0, %s133
      %s134 = sphi 0, %s131
      %s135 = sphi 0, %s134
      %s151 = sphi 0, %s135
    $region4: #{tpu_custom_call.1} parent=1 // loop_header_branch
      %21 = sbr.rel (%p19) target = $region8
    $region5: #{tpu_custom_call.1} parent=1 // loop_body
      %s23 = ssub.s32 %s18, 1
      %s24 = ssub.s32 %s18, 2
      %s34 = sadd.s32 1, %s27
      %p35 = scmp.ge.s32.totalorder %s34, 11
      %s36 = scalar_select %p35, 0, %s34
      %s37 = sadd.s32 1, %s26
      %s38 = scalar_select %p35, %s37, %s26
      %p39 = scmp.ge.s32.totalorder %s38, 1
      %s40 = scalar_select %p39, 0, %s38
      %s41 = sadd.s32 1, %s25
      %s42 = scalar_select %p39, %s41, %s25
      %p43 = scmp.ge.s32.totalorder %s42, 2
      %s44 = scalar_select %p43, 0, %s42
      %s45 = ssub.s32 %s25, %s44
      %s46 = ssub.s32 %s27, %s36
      %s47 = sor.u32 %s45, %s46
      %p48 = scmp.eq.s32.totalorder %s47, 0
      %s50 = sadd.s32 %s49, 1
      %s51 = scalar_select %p48, %s49, %s50
      %p54 = pneg %p48
      %p55 = scmp.eq.s32.totalorder %s18, 21
      %p56 = por %p54, %p55
      %p57 = scmp.ne.s32.totalorder %s49, %s52
      %p58 = scmp.eq.s32.totalorder %s18, 0
      %p59 = por %p57, %p58
      %p60 = scmp.ne.s32.totalorder %s49, %s52
      %p61 = scmp.eq.s32.totalorder %s23, 21
      %p62 = por %p60, %p61
      %p63 = scmp.ne.s32.totalorder %s52, %s53
      %p64 = scmp.eq.s32.totalorder %s23, 0
      %p65 = por %p63, %p64
      %p66 = scmp.ne.s32.totalorder %s52, %s53
      %p67 = scmp.eq.s32.totalorder %s24, 21
      %p68 = por %p66, %p67
      %p70 = scmp.ne.s32.totalorder %s53, %s69
      %p71 = scmp.eq.s32.totalorder %s24, 0
      %p72 = por %p70, %p71
      %s73 = ssub.s32 %s27, %s36
      %s74 = ssub.s32 %s26, %s40
      %s75 = sor.u32 %s73, %s74
      %p76 = scmp.eq.s32.totalorder %s75, 0
      %s78 = sadd.s32 %s77, 1
      %s79 = scalar_select %p76, %s77, %s78
      %p82 = pneg %p76
      %p83 = scmp.eq.s32.totalorder %s18, 21
      %p84 = por %p82, %p83
      %p85 = scmp.ne.s32.totalorder %s77, %s80
      %p86 = scmp.eq.s32.totalorder %s18, 0
      %p87 = por %p85, %p86
      %p88 = scmp.ne.s32.totalorder %s77, %s80
      %p89 = scmp.eq.s32.totalorder %s23, 21
      %p90 = por %p88, %p89
      %p91 = scmp.ne.s32.totalorder %s80, %s81
      %p92 = scmp.eq.s32.totalorder %s23, 0
      %p93 = por %p91, %p92
      %p94 = scmp.ne.s32.totalorder %s80, %s81
      %p95 = scmp.eq.s32.totalorder %s24, 21
      %p96 = por %p94, %p95
      %p98 = scmp.ne.s32.totalorder %s81, %s97
      %p99 = scmp.eq.s32.totalorder %s24, 0
      %p100 = por %p98, %p99
      %s101 = ssub.s32 %s26, %s40
      %p102 = scmp.eq.s32.totalorder %s101, 0
      %s104 = sadd.s32 %s103, 1
      %s105 = scalar_select %p102, %s103, %s104
      %p108 = pneg %p102
      %p109 = scmp.eq.s32.totalorder %s18, 21
      %p110 = por %p108, %p109
      %p111 = scmp.ne.s32.totalorder %s103, %s106
      %p112 = scmp.eq.s32.totalorder %s18, 0
      %p113 = por %p111, %p112
      %p114 = scmp.ne.s32.totalorder %s103, %s106
      %p115 = scmp.eq.s32.totalorder %s23, 21
      %p116 = por %p114, %p115
      %p117 = scmp.ne.s32.totalorder %s106, %s107
      %p118 = scmp.eq.s32.totalorder %s23, 0
      %p119 = por %p117, %p118
      %p120 = scmp.ne.s32.totalorder %s106, %s107
      %p121 = scmp.eq.s32.totalorder %s24, 21
      %p122 = por %p120, %p121
      %p124 = scmp.ne.s32.totalorder %s107, %s123
      %p125 = scmp.eq.s32.totalorder %s24, 0
      %p126 = por %p124, %p125
      %s127 = ssub.s32 %s25, %s44
      %s128 = ssub.s32 %s26, %s40
      %s129 = sor.u32 %s127, %s128
      %p130 = scmp.eq.s32.totalorder %s129, 0
      %s132 = sadd.s32 %s131, 1
      %s133 = scalar_select %p130, %s131, %s132
      %p136 = pneg %p130
      %p137 = scmp.eq.s32.totalorder %s18, 21
      %p138 = por %p136, %p137
      %p139 = scmp.ne.s32.totalorder %s131, %s134
      %p140 = scmp.eq.s32.totalorder %s18, 0
      %p141 = por %p139, %p140
      %p142 = scmp.ne.s32.totalorder %s131, %s134
      %p143 = scmp.eq.s32.totalorder %s23, 21
      %p144 = por %p142, %p143
      %p145 = scmp.ne.s32.totalorder %s134, %s135
      %p146 = scmp.eq.s32.totalorder %s23, 0
      %p147 = por %p145, %p146
      %p148 = scmp.ne.s32.totalorder %s134, %s135
      %p149 = scmp.eq.s32.totalorder %s24, 21
      %p150 = por %p148, %p149
      %p152 = scmp.ne.s32.totalorder %s135, %s151
      %p153 = scmp.eq.s32.totalorder %s24, 0
      %p154 = por %p152, %p153
      %p155 = scmp.le.s32.totalorder 1, %s18
      %p156 = scmp.lt.s32.totalorder %s18, 23
      %p157 = pnand %p155, %p156
      %p158 = pneg %p157
      // Predicated region
      $region9: #{tpu_custom_call.1} parent=5 // pred_check
        _
      $region10: #{tpu_custom_call.1} parent=5 // pred_check_branch
        %160 = sbr.rel (%p157) target = $region12
      $region11: #{tpu_custom_call.1} parent=5 // pred_region
        %s161 = ssub.s32 %s18, 1
        // Predicated region
        $region13: #{tpu_custom_call.1} parent=11 // pred_check
          %p162 = pneg %p119
        $region14: #{tpu_custom_call.1} parent=11 // pred_check_branch
          %164 = sbr.rel (%p162) target = $region16
        $region15: #{tpu_custom_call.1} parent=11 // pred_region
          %s166 = ssub.s32 16, 16
          %167 = vsyncadd [#allocation7], %s166
          %s168 = smul.addr %s29, 16
          %s169 = scalar_lea.hbm %s2, %s168
          %s171 = sshll.u32 [#allocation8], 4
          %s172 = int_to_ptr.vmem [resolvable:$true] %s171
          %174 = dma.hbm_to_vmem [thread:$0]  %s169, 16, %s172, [#allocation7]
        $region16: #{tpu_custom_call.1} parent=11 // pred_fallthru
          _
      $region12: #{tpu_custom_call.1} parent=5 // pred_fallthru
        _
      %p175 = scmp.lt.s32.totalorder %s18, 22
      // Predicated region
      $region17: #{tpu_custom_call.1} parent=5 // pred_check
        %p176 = pneg %p175
      $region18: #{tpu_custom_call.1} parent=5 // pred_check_branch
        %178 = sbr.rel (%p176) target = $region20
      $region19: #{tpu_custom_call.1} parent=5 // pred_region
        // Predicated region
        $region21: #{tpu_custom_call.1} parent=19 // pred_check
          %p179 = pneg %p59
        $region22: #{tpu_custom_call.1} parent=19 // pred_check_branch
          %181 = sbr.rel (%p179) target = $region24
        $region23: #{tpu_custom_call.1} parent=19 // pred_region
          %s182 = sand.u32 %s49, 1
          %s183 = scalar_lea.sflag [#allocation4], %s182
          %s184 = sand.u32 %s49, 1
          %s185 = smul.addr %s184, 128
          %s186 = scalar_lea.vmem [#allocation3], %s185
          %s187 = smul.u32 32, %s25
          %s189 = ssub.s32 2048, 2048
          %190 = vsyncadd %s183, %s189
          %s191 = smul.addr %s187, 11
          %s192 = sadd.s32 %s27, %s191
          %s193 = smul.addr %s192, 64
          %s194 = scalar_lea.hbm %s0, %s193
          %s195 = sshll.u32 %s186, 4
          %s196 = int_to_ptr.vmem [resolvable:$true] %s195
          %201 = dma.hbm_to_vmem [thread:$0]  %s194, 2048, %s196, %s183, 704, 64, 4
        $region24: #{tpu_custom_call.1} parent=19 // pred_fallthru
          _
        // Predicated region
        $region25: #{tpu_custom_call.1} parent=19 // pred_check
          %p202 = pneg %p87
        $region26: #{tpu_custom_call.1} parent=19 // pred_check_branch
          %204 = sbr.rel (%p202) target = $region28
        $region27: #{tpu_custom_call.1} parent=19 // pred_region
          %s205 = sand.u32 %s18, 1
          %s206 = scalar_lea.sflag [#allocation7], %s205
          %s207 = sand.u32 %s77, 1
          %s208 = smul.addr %s207, 64
          %s209 = scalar_lea.vmem [#allocation6], %s208
          %s210 = smul.u32 16, %s27
          %s212 = ssub.s32 1024, 1024
          %213 = vsyncadd %s206, %s212
          %s214 = sadd.s32 %s26, %s210
          %s215 = smul.addr %s214, 64
          %s216 = scalar_lea.hbm %s1, %s215
          %s217 = sshll.u32 %s209, 4
          %s218 = int_to_ptr.vmem [resolvable:$true] %s217
          %223 = dma.hbm_to_vmem [thread:$0]  %s216, 1024, %s218, %s206, 64, 64, 4
        $region28: #{tpu_custom_call.1} parent=19 // pred_fallthru
          _
      $region20: #{tpu_custom_call.1} parent=5 // pred_fallthru
        _
      %p224 = scmp.le.s32.totalorder 1, %s18
      %p225 = scmp.lt.s32.totalorder %s18, 23
      %p226 = pnand %p224, %p225
      %p227 = pneg %p226
      // Predicated region
      $region29: #{tpu_custom_call.1} parent=5 // pred_check
        _
      $region30: #{tpu_custom_call.1} parent=5 // pred_check_branch
        %229 = sbr.rel (%p226) target = $region32
      $region31: #{tpu_custom_call.1} parent=5 // pred_region
        %s230 = ssub.s32 %s18, 1
        %s231 = sand.u32 %s52, 1
        %s232 = scalar_lea.sflag [#allocation4], %s231
        %s233 = sand.u32 %s52, 1
        %s234 = smul.addr %s233, 128
        %s235 = scalar_lea.vmem [#allocation3], %s234
        // Predicated region
        $region33: #{tpu_custom_call.1} parent=31 // pred_check
          %p236 = pneg %p65
        $region34: #{tpu_custom_call.1} parent=31 // pred_check_branch
          %238 = sbr.rel (%p236) target = $region36
        $region35: #{tpu_custom_call.1} parent=31 // pred_region
          %239 = dma.done %s232, 2048
        $region36: #{tpu_custom_call.1} parent=31 // pred_fallthru
          _
        %s240 = sand.u32 %s23, 1
        %s241 = scalar_lea.sflag [#allocation7], %s240
        %s242 = sand.u32 %s80, 1
        %s243 = smul.addr %s242, 64
        %s244 = scalar_lea.vmem [#allocation6], %s243
        // Predicated region
        $region37: #{tpu_custom_call.1} parent=31 // pred_check
          %p245 = pneg %p93
        $region38: #{tpu_custom_call.1} parent=31 // pred_check_branch
          %247 = sbr.rel (%p245) target = $region40
        $region39: #{tpu_custom_call.1} parent=31 // pred_region
          %248 = dma.done %s241, 1024
        $region40: #{tpu_custom_call.1} parent=31 // pred_fallthru
          _
        // Predicated region
        $region41: #{tpu_custom_call.1} parent=31 // pred_check
          %p249 = pneg %p119
        $region42: #{tpu_custom_call.1} parent=31 // pred_check_branch
          %251 = sbr.rel (%p249) target = $region44
        $region43: #{tpu_custom_call.1} parent=31 // pred_region
          %252 = dma.done [#allocation7], 16
        $region44: #{tpu_custom_call.1} parent=31 // pred_fallthru
          _
        %s253 = sand.u32 %s52, 1
        %s254 = scalar_lea.sflag [#allocation4], %s253
        %s255 = sand.u32 %s52, 1
        %s256 = smul.addr %s255, 128
        %s257 = scalar_lea.vmem [#allocation3], %s256
        %p258 = pneg %p65
        %p259 = pneg %p62
        %s260 = sand.u32 %s23, 1
        %s261 = scalar_lea.sflag [#allocation7], %s260
        %s262 = sand.u32 %s80, 1
        %s263 = smul.addr %s262, 64
        %s264 = scalar_lea.vmem [#allocation6], %s263
        %p265 = pneg %p93
        %p266 = pneg %p90
        %p267 = pneg %p119
        %p268 = pneg %p116
        %p269 = pneg %p147
        %p270 = pneg %p144
        %s271 = sand.u32 %s134, 1
        %s272 = scalar_lea.sflag [#allocation5], %s271
        %s273 = sand.u32 %s134, 1
        %s274 = smul.addr %s273, 256
        %s275 = scalar_lea.vmem [#allocation9], %s274
        %s276 = smul.u32 32, %s28
        %s277 = smul.u32 16, %s30
        %s278 = smul.u32 32, %s28
        %p280 = scmp.eq.s32.totalorder %s30, 0
        // Predicated region
        $region45: #{tpu_custom_call.1} parent=31 // pred_check
          %p281 = pneg %p280
        $region46: #{tpu_custom_call.1} parent=31 // pred_check_branch
          %283 = sbr.rel (%p281) target = $region48
        $region47: #{tpu_custom_call.1} parent=31 // pred_region
          %284 = vst [vmem:[#allocation2] sm:$0xff] 0.0
          %285 = vst [vmem:[#allocation2 + $0x8] sm:$0xff] 0.0
          %286 = vst [vmem:[#allocation2 + $0x10] sm:$0xff] 0.0
          %287 = vst [vmem:[#allocation2 + $0x18] sm:$0xff] 0.0
          %288 = vst [vmem:[#allocation2 + $0x20] sm:$0xff] 0.0
          %289 = vst [vmem:[#allocation2 + $0x28] sm:$0xff] 0.0
          %290 = vst [vmem:[#allocation2 + $0x30] sm:$0xff] 0.0
          %291 = vst [vmem:[#allocation2 + $0x38] sm:$0xff] 0.0
          %292 = vst [vmem:[#allocation2 + $0x40] sm:$0xff] 0.0
          %293 = vst [vmem:[#allocation2 + $0x48] sm:$0xff] 0.0
          %294 = vst [vmem:[#allocation2 + $0x50] sm:$0xff] 0.0
          %295 = vst [vmem:[#allocation2 + $0x58] sm:$0xff] 0.0
          %296 = vst [vmem:[#allocation2 + $0x60] sm:$0xff] 0.0
          %297 = vst [vmem:[#allocation2 + $0x68] sm:$0xff] 0.0
          %298 = vst [vmem:[#allocation2 + $0x70] sm:$0xff] 0.0
          %299 = vst [vmem:[#allocation2 + $0x78] sm:$0xff] 0.0
          %300 = vst [vmem:[#allocation2 + $0x80] sm:$0xff] 0.0
          %301 = vst [vmem:[#allocation2 + $0x88] sm:$0xff] 0.0
          %302 = vst [vmem:[#allocation2 + $0x90] sm:$0xff] 0.0
          %303 = vst [vmem:[#allocation2 + $0x98] sm:$0xff] 0.0
          %304 = vst [vmem:[#allocation2 + $0xa0] sm:$0xff] 0.0
          %305 = vst [vmem:[#allocation2 + $0xa8] sm:$0xff] 0.0
          %306 = vst [vmem:[#allocation2 + $0xb0] sm:$0xff] 0.0
          %307 = vst [vmem:[#allocation2 + $0xb8] sm:$0xff] 0.0
          %308 = vst [vmem:[#allocation2 + $0xc0] sm:$0xff] 0.0
          %309 = vst [vmem:[#allocation2 + $0xc8] sm:$0xff] 0.0
          %310 = vst [vmem:[#allocation2 + $0xd0] sm:$0xff] 0.0
          %311 = vst [vmem:[#allocation2 + $0xd8] sm:$0xff] 0.0
          %312 = vst [vmem:[#allocation2 + $0xe0] sm:$0xff] 0.0
          %313 = vst [vmem:[#allocation2 + $0xe8] sm:$0xff] 0.0
          %314 = vst [vmem:[#allocation2 + $0xf0] sm:$0xff] 0.0
          %315 = vst [vmem:[#allocation2 + $0xf8] sm:$0xff] 0.0
        $region48: #{tpu_custom_call.1} parent=31 // pred_fallthru
          _
        %v316 = vld [vmem:[#allocation2] sm:$0xff]
        %v317 = vld [vmem:[#allocation2 + $0x8] sm:$0xff]
        %v318 = vld [vmem:[#allocation2 + $0x10] sm:$0xff]
        %v319 = vld [vmem:[#allocation2 + $0x18] sm:$0xff]
        %v320 = vld [vmem:[#allocation2 + $0x20] sm:$0xff]
        %v321 = vld [vmem:[#allocation2 + $0x28] sm:$0xff]
        %v322 = vld [vmem:[#allocation2 + $0x30] sm:$0xff]
        %v323 = vld [vmem:[#allocation2 + $0x38] sm:$0xff]
        %v324 = vld [vmem:[#allocation2 + $0x40] sm:$0xff]
        %v325 = vld [vmem:[#allocation2 + $0x48] sm:$0xff]
        %v326 = vld [vmem:[#allocation2 + $0x50] sm:$0xff]
        %v327 = vld [vmem:[#allocation2 + $0x58] sm:$0xff]
        %v328 = vld [vmem:[#allocation2 + $0x60] sm:$0xff]
        %v329 = vld [vmem:[#allocation2 + $0x68] sm:$0xff]
        %v330 = vld [vmem:[#allocation2 + $0x70] sm:$0xff]
        %v331 = vld [vmem:[#allocation2 + $0x78] sm:$0xff]
        %v332 = vld [vmem:[#allocation2 + $0x80] sm:$0xff]
        %v333 = vld [vmem:[#allocation2 + $0x88] sm:$0xff]
        %v334 = vld [vmem:[#allocation2 + $0x90] sm:$0xff]
        %v335 = vld [vmem:[#allocation2 + $0x98] sm:$0xff]
        %v336 = vld [vmem:[#allocation2 + $0xa0] sm:$0xff]
        %v337 = vld [vmem:[#allocation2 + $0xa8] sm:$0xff]
        %v338 = vld [vmem:[#allocation2 + $0xb0] sm:$0xff]
        %v339 = vld [vmem:[#allocation2 + $0xb8] sm:$0xff]
        %v340 = vld [vmem:[#allocation2 + $0xc0] sm:$0xff]
        %v341 = vld [vmem:[#allocation2 + $0xc8] sm:$0xff]
        %v342 = vld [vmem:[#allocation2 + $0xd0] sm:$0xff]
        %v343 = vld [vmem:[#allocation2 + $0xd8] sm:$0xff]
        %v344 = vld [vmem:[#allocation2 + $0xe0] sm:$0xff]
        %v345 = vld [vmem:[#allocation2 + $0xe8] sm:$0xff]
        %v346 = vld [vmem:[#allocation2 + $0xf0] sm:$0xff]
        %v347 = vld [vmem:[#allocation2 + $0xf8] sm:$0xff]
        %v348 = vld [vmem:[%s235] sm:$0xf]
        %v349 = vld [vmem:[%s235 + $0x4] sm:$0xf]
        %v350 = vld [vmem:[%s235 + $0x8] sm:$0xf]
        %v351 = vld [vmem:[%s235 + $0xc] sm:$0xf]
        %v352 = vld [vmem:[%s235 + $0x10] sm:$0xf]
        %v353 = vld [vmem:[%s235 + $0x14] sm:$0xf]
        %v354 = vld [vmem:[%s235 + $0x18] sm:$0xf]
        %v355 = vld [vmem:[%s235 + $0x1c] sm:$0xf]
        %v356 = vld [vmem:[%s235 + $0x20] sm:$0xf]
        %v357 = vld [vmem:[%s235 + $0x24] sm:$0xf]
        %v358 = vld [vmem:[%s235 + $0x28] sm:$0xf]
        %v359 = vld [vmem:[%s235 + $0x2c] sm:$0xf]
        %v360 = vld [vmem:[%s235 + $0x30] sm:$0xf]
        %v361 = vld [vmem:[%s235 + $0x34] sm:$0xf]
        %v362 = vld [vmem:[%s235 + $0x38] sm:$0xf]
        %v363 = vld [vmem:[%s235 + $0x3c] sm:$0xf]
        %v364 = vld [vmem:[%s235 + $0x40] sm:$0xf]
        %v365 = vld [vmem:[%s235 + $0x44] sm:$0xf]
        %v366 = vld [vmem:[%s235 + $0x48] sm:$0xf]
        %v367 = vld [vmem:[%s235 + $0x4c] sm:$0xf]
        %v368 = vld [vmem:[%s235 + $0x50] sm:$0xf]
        %v369 = vld [vmem:[%s235 + $0x54] sm:$0xf]
        %v370 = vld [vmem:[%s235 + $0x58] sm:$0xf]
        %v371 = vld [vmem:[%s235 + $0x5c] sm:$0xf]
        %v372 = vld [vmem:[%s235 + $0x60] sm:$0xf]
        %v373 = vld [vmem:[%s235 + $0x64] sm:$0xf]
        %v374 = vld [vmem:[%s235 + $0x68] sm:$0xf]
        %v375 = vld [vmem:[%s235 + $0x6c] sm:$0xf]
        %v376 = vld [vmem:[%s235 + $0x70] sm:$0xf]
        %v377 = vld [vmem:[%s235 + $0x74] sm:$0xf]
        %v378 = vld [vmem:[%s235 + $0x78] sm:$0xf]
        %v379 = vld [vmem:[%s235 + $0x7c] sm:$0xf]
        %v380 = vld [vmem:[%s244] sm:$0xf]
        %v381 = vld [vmem:[%s244 + $0x4] sm:$0xf]
        %v382 = vld [vmem:[%s244 + $0x8] sm:$0xf]
        %v383 = vld [vmem:[%s244 + $0xc] sm:$0xf]
        %v384 = vld [vmem:[%s244 + $0x10] sm:$0xf]
        %v385 = vld [vmem:[%s244 + $0x14] sm:$0xf]
        %v386 = vld [vmem:[%s244 + $0x18] sm:$0xf]
        %v387 = vld [vmem:[%s244 + $0x1c] sm:$0xf]
        %v388 = vld [vmem:[%s244 + $0x20] sm:$0xf]
        %v389 = vld [vmem:[%s244 + $0x24] sm:$0xf]
        %v390 = vld [vmem:[%s244 + $0x28] sm:$0xf]
        %v391 = vld [vmem:[%s244 + $0x2c] sm:$0xf]
        %v392 = vld [vmem:[%s244 + $0x30] sm:$0xf]
        %v393 = vld [vmem:[%s244 + $0x34] sm:$0xf]
        %v394 = vld [vmem:[%s244 + $0x38] sm:$0xf]
        %v395 = vld [vmem:[%s244 + $0x3c] sm:$0xf]
        %v428 = vunpack.c.l.b16 %v348
        %v429 = vunpack.c.l.b16 %v349
        %v430 = vunpack.c.l.b16 %v350
        %v431 = vunpack.c.l.b16 %v351
        %v432 = vunpack.c.l.b16 %v352
        %v433 = vunpack.c.l.b16 %v353
        %v434 = vunpack.c.l.b16 %v354
        %v435 = vunpack.c.l.b16 %v355
        %v436 = vunpack.c.l.b16 %v356
        %v437 = vunpack.c.l.b16 %v357
        %v438 = vunpack.c.l.b16 %v358
        %v439 = vunpack.c.l.b16 %v359
        %v440 = vunpack.c.l.b16 %v360
        %v441 = vunpack.c.l.b16 %v361
        %v442 = vunpack.c.l.b16 %v362
        %v443 = vunpack.c.l.b16 %v363
        %v444 = vunpack.c.l.b16 %v364
        %v445 = vunpack.c.l.b16 %v365
        %v446 = vunpack.c.l.b16 %v366
        %v447 = vunpack.c.l.b16 %v367
        %v448 = vunpack.c.l.b16 %v368
        %v449 = vunpack.c.l.b16 %v369
        %v450 = vunpack.c.l.b16 %v370
        %v451 = vunpack.c.l.b16 %v371
        %v452 = vunpack.c.l.b16 %v372
        %v453 = vunpack.c.l.b16 %v373
        %v454 = vunpack.c.l.b16 %v374
        %v455 = vunpack.c.l.b16 %v375
        %v456 = vunpack.c.l.b16 %v376
        %v457 = vunpack.c.l.b16 %v377
        %v458 = vunpack.c.l.b16 %v378
        %v459 = vunpack.c.l.b16 %v379
        %v460 = vpack.c.b16 %v429, %v428
        %v461 = vpack.c.b16 %v431, %v430
        %v462 = vpack.c.b16 %v433, %v432
        %v463 = vpack.c.b16 %v435, %v434
        %v464 = vpack.c.b16 %v437, %v436
        %v465 = vpack.c.b16 %v439, %v438
        %v466 = vpack.c.b16 %v441, %v440
        %v467 = vpack.c.b16 %v443, %v442
        %v468 = vpack.c.b16 %v445, %v444
        %v469 = vpack.c.b16 %v447, %v446
        %v470 = vpack.c.b16 %v449, %v448
        %v471 = vpack.c.b16 %v451, %v450
        %v472 = vpack.c.b16 %v453, %v452
        %v473 = vpack.c.b16 %v455, %v454
        %v474 = vpack.c.b16 %v457, %v456
        %v475 = vpack.c.b16 %v459, %v458
        %v508 = vunpack.c.l.b16 %v380
        %v509 = vunpack.c.l.b16 %v381
        %v510 = vunpack.c.l.b16 %v382
        %v511 = vunpack.c.l.b16 %v383
        %v512 = vunpack.c.l.b16 %v384
        %v513 = vunpack.c.l.b16 %v385
        %v514 = vunpack.c.l.b16 %v386
        %v515 = vunpack.c.l.b16 %v387
        %v516 = vunpack.c.l.b16 %v388
        %v517 = vunpack.c.l.b16 %v389
        %v518 = vunpack.c.l.b16 %v390
        %v519 = vunpack.c.l.b16 %v391
        %v520 = vunpack.c.l.b16 %v392
        %v521 = vunpack.c.l.b16 %v393
        %v522 = vunpack.c.l.b16 %v394
        %v523 = vunpack.c.l.b16 %v395
        %v524 = vpack.c.b16 %v509, %v508
        %v525 = vpack.c.b16 %v511, %v510
        %v526 = vpack.c.b16 %v513, %v512
        %v527 = vpack.c.b16 %v515, %v514
        %v528 = vpack.c.b16 %v517, %v516
        %v529 = vpack.c.b16 %v519, %v518
        %v530 = vpack.c.b16 %v521, %v520
        %v531 = vpack.c.b16 %v523, %v522
        %540 = vmatprep.subr.bf16.mxu0 0
        %541 = vmatpush1.bf16.msra.mxu0 %v531
        %542 = vmatprep.subr.bf16.mxu0 0
        %543 = vmatpush1.bf16.msra.mxu0 %v530
        %544 = vmatprep.subr.bf16.mxu0 0
        %545 = vmatpush1.bf16.msra.mxu0 %v529
        %546 = vmatprep.subr.bf16.mxu0 0
        %547 = vmatpush1.bf16.msra.mxu0 %v528
        %548 = vmatprep.subr.bf16.mxu0 0
        %549 = vmatpush1.bf16.msra.mxu0 %v527
        %550 = vmatprep.subr.bf16.mxu0 0
        %551 = vmatpush1.bf16.msra.mxu0 %v526
        %552 = vmatprep.subr.bf16.mxu0 0
        %553 = vmatpush1.bf16.msra.mxu0 %v525
        %554 = vmatprep.subr.bf16.mxu0 0
        %555 = vmatpush1.bf16.msra.mxu0 %v524
        %556 = vmatprep.subr.bf16.mxu0 0
        %557 = vmatpush2.bf16.msra.mxu0 0
        %558 = vmatprep.subr.bf16.mxu0 0
        %559 = vmatpush2.bf16.msra.mxu0 0
        %560 = vmatprep.subr.bf16.mxu0 0
        %561 = vmatpush2.bf16.msra.mxu0 0
        %562 = vmatprep.subr.bf16.mxu0 0
        %563 = vmatpush2.bf16.msra.mxu0 0
        %564 = vmatprep.subr.bf16.mxu0 0
        %565 = vmatpush2.bf16.msra.mxu0 0
        %566 = vmatprep.subr.bf16.mxu0 0
        %567 = vmatpush2.bf16.msra.mxu0 0
        %568 = vmatprep.subr.bf16.mxu0 0
        %569 = vmatpush2.bf16.msra.mxu0 0
        %570 = vmatprep.subr.bf16.mxu0 0
        %571 = vmatpush2.bf16.msra.mxu0 0
        %572 = vmatprep.mubr.bf16.mxu0 0
        %573 = vmatmul.mubr.bf16.gmra.mxu0 %v460
        %v574 = vpop.f32.mrf.mxu0
        %v575 = vadd.f32 0.0, %v574
        %v576 = vpop.f32.mrf.mxu0
        %v577 = vpop.f32.mrf.mxu0
        %v578 = vadd.f32 0.0, %v577
        %v579 = vpop.f32.mrf.mxu0
        %580 = vmatprep.mubr.bf16.mxu0 0
        %581 = vmatmul.mubr.bf16.gmra.mxu0 %v461
        %v582 = vpop.f32.mrf.mxu0
        %v583 = vadd.f32 0.0, %v582
        %v584 = vpop.f32.mrf.mxu0
        %v585 = vpop.f32.mrf.mxu0
        %v586 = vadd.f32 0.0, %v585
        %v587 = vpop.f32.mrf.mxu0
        %588 = vmatprep.mubr.bf16.mxu0 0
        %589 = vmatmul.mubr.bf16.gmra.mxu0 %v462
        %v590 = vpop.f32.mrf.mxu0
        %v591 = vadd.f32 0.0, %v590
        %v592 = vpop.f32.mrf.mxu0
        %v593 = vpop.f32.mrf.mxu0
        %v594 = vadd.f32 0.0, %v593
        %v595 = vpop.f32.mrf.mxu0
        %596 = vmatprep.mubr.bf16.mxu0 0
        %597 = vmatmul.mubr.bf16.gmra.mxu0 %v463
        %v598 = vpop.f32.mrf.mxu0
        %v599 = vadd.f32 0.0, %v598
        %v600 = vpop.f32.mrf.mxu0
        %v601 = vpop.f32.mrf.mxu0
        %v602 = vadd.f32 0.0, %v601
        %v603 = vpop.f32.mrf.mxu0
        %604 = vmatprep.mubr.bf16.mxu0 0
        %605 = vmatmul.mubr.bf16.gmra.mxu0 %v464
        %v606 = vpop.f32.mrf.mxu0
        %v607 = vadd.f32 0.0, %v606
        %v608 = vpop.f32.mrf.mxu0
        %v609 = vpop.f32.mrf.mxu0
        %v610 = vadd.f32 0.0, %v609
        %v611 = vpop.f32.mrf.mxu0
        %612 = vmatprep.mubr.bf16.mxu0 0
        %613 = vmatmul.mubr.bf16.gmra.mxu0 %v465
        %v614 = vpop.f32.mrf.mxu0
        %v615 = vadd.f32 0.0, %v614
        %v616 = vpop.f32.mrf.mxu0
        %v617 = vpop.f32.mrf.mxu0
        %v618 = vadd.f32 0.0, %v617
        %v619 = vpop.f32.mrf.mxu0
        %620 = vmatprep.mubr.bf16.mxu0 0
        %621 = vmatmul.mubr.bf16.gmra.mxu0 %v466
        %v622 = vpop.f32.mrf.mxu0
        %v623 = vadd.f32 0.0, %v622
        %v624 = vpop.f32.mrf.mxu0
        %v625 = vpop.f32.mrf.mxu0
        %v626 = vadd.f32 0.0, %v625
        %v627 = vpop.f32.mrf.mxu0
        %628 = vmatprep.mubr.bf16.mxu0 0
        %629 = vmatmul.mubr.bf16.gmra.mxu0 %v467
        %v630 = vpop.f32.mrf.mxu0
        %v631 = vadd.f32 0.0, %v630
        %v632 = vpop.f32.mrf.mxu0
        %v633 = vpop.f32.mrf.mxu0
        %v634 = vadd.f32 0.0, %v633
        %v635 = vpop.f32.mrf.mxu0
        %636 = vmatprep.mubr.bf16.mxu0 0
        %637 = vmatmul.mubr.bf16.gmra.mxu0 %v468
        %v638 = vpop.f32.mrf.mxu0
        %v639 = vadd.f32 0.0, %v638
        %v640 = vpop.f32.mrf.mxu0
        %v641 = vpop.f32.mrf.mxu0
        %v642 = vadd.f32 0.0, %v641
        %v643 = vpop.f32.mrf.mxu0
        %644 = vmatprep.mubr.bf16.mxu0 0
        %645 = vmatmul.mubr.bf16.gmra.mxu0 %v469
        %v646 = vpop.f32.mrf.mxu0
        %v647 = vadd.f32 0.0, %v646
        %v648 = vpop.f32.mrf.mxu0
        %v649 = vpop.f32.mrf.mxu0
        %v650 = vadd.f32 0.0, %v649
        %v651 = vpop.f32.mrf.mxu0
        %652 = vmatprep.mubr.bf16.mxu0 0
        %653 = vmatmul.mubr.bf16.gmra.mxu0 %v470
        %v654 = vpop.f32.mrf.mxu0
        %v655 = vadd.f32 0.0, %v654
        %v656 = vpop.f32.mrf.mxu0
        %v657 = vpop.f32.mrf.mxu0
        %v658 = vadd.f32 0.0, %v657
        %v659 = vpop.f32.mrf.mxu0
        %660 = vmatprep.mubr.bf16.mxu0 0
        %661 = vmatmul.mubr.bf16.gmra.mxu0 %v471
        %v662 = vpop.f32.mrf.mxu0
        %v663 = vadd.f32 0.0, %v662
        %v664 = vpop.f32.mrf.mxu0
        %v665 = vpop.f32.mrf.mxu0
        %v666 = vadd.f32 0.0, %v665
        %v667 = vpop.f32.mrf.mxu0
        %668 = vmatprep.mubr.bf16.mxu0 0
        %669 = vmatmul.mubr.bf16.gmra.mxu0 %v472
        %v670 = vpop.f32.mrf.mxu0
        %v671 = vadd.f32 0.0, %v670
        %v672 = vpop.f32.mrf.mxu0
        %v673 = vpop.f32.mrf.mxu0
        %v674 = vadd.f32 0.0, %v673
        %v675 = vpop.f32.mrf.mxu0
        %676 = vmatprep.mubr.bf16.mxu0 0
        %677 = vmatmul.mubr.bf16.gmra.mxu0 %v473
        %v678 = vpop.f32.mrf.mxu0
        %v679 = vadd.f32 0.0, %v678
        %v680 = vpop.f32.mrf.mxu0
        %v681 = vpop.f32.mrf.mxu0
        %v682 = vadd.f32 0.0, %v681
        %v683 = vpop.f32.mrf.mxu0
        %684 = vmatprep.mubr.bf16.mxu0 0
        %685 = vmatmul.mubr.bf16.gmra.mxu0 %v474
        %v686 = vpop.f32.mrf.mxu0
        %v687 = vadd.f32 0.0, %v686
        %v688 = vpop.f32.mrf.mxu0
        %v689 = vpop.f32.mrf.mxu0
        %v690 = vadd.f32 0.0, %v689
        %v691 = vpop.f32.mrf.mxu0
        %692 = vmatprep.mubr.bf16.mxu0 0
        %693 = vmatmul.mubr.bf16.gmra.mxu0 %v475
        %v694 = vpop.f32.mrf.mxu0
        %v695 = vadd.f32 0.0, %v694
        %v696 = vpop.f32.mrf.mxu0
        %v697 = vpop.f32.mrf.mxu0
        %v698 = vadd.f32 0.0, %v697
        %v699 = vpop.f32.mrf.mxu0
        %700 = vdwg.mxu0
        %v701 = vadd.f32 %v316, %v575
        %v702 = vadd.f32 %v317, %v578
        %v703 = vadd.f32 %v318, %v583
        %v704 = vadd.f32 %v319, %v586
        %v705 = vadd.f32 %v320, %v591
        %v706 = vadd.f32 %v321, %v594
        %v707 = vadd.f32 %v322, %v599
        %v708 = vadd.f32 %v323, %v602
        %v709 = vadd.f32 %v324, %v607
        %v710 = vadd.f32 %v325, %v610
        %v711 = vadd.f32 %v326, %v615
        %v712 = vadd.f32 %v327, %v618
        %v713 = vadd.f32 %v328, %v623
        %v714 = vadd.f32 %v329, %v626
        %v715 = vadd.f32 %v330, %v631
        %v716 = vadd.f32 %v331, %v634
        %v717 = vadd.f32 %v332, %v639
        %v718 = vadd.f32 %v333, %v642
        %v719 = vadd.f32 %v334, %v647
        %v720 = vadd.f32 %v335, %v650
        %v721 = vadd.f32 %v336, %v655
        %v722 = vadd.f32 %v337, %v658
        %v723 = vadd.f32 %v338, %v663
        %v724 = vadd.f32 %v339, %v666
        %v725 = vadd.f32 %v340, %v671
        %v726 = vadd.f32 %v341, %v674
        %v727 = vadd.f32 %v342, %v679
        %v728 = vadd.f32 %v343, %v682
        %v729 = vadd.f32 %v344, %v687
        %v730 = vadd.f32 %v345, %v690
        %v731 = vadd.f32 %v346, %v695
        %v732 = vadd.f32 %v347, %v698
        %733 = vst [vmem:[#allocation2] sm:$0xff] %v701
        %734 = vst [vmem:[#allocation2 + $0x8] sm:$0xff] %v702
        %735 = vst [vmem:[#allocation2 + $0x10] sm:$0xff] %v703
        %736 = vst [vmem:[#allocation2 + $0x18] sm:$0xff] %v704
        %737 = vst [vmem:[#allocation2 + $0x20] sm:$0xff] %v705
        %738 = vst [vmem:[#allocation2 + $0x28] sm:$0xff] %v706
        %739 = vst [vmem:[#allocation2 + $0x30] sm:$0xff] %v707
        %740 = vst [vmem:[#allocation2 + $0x38] sm:$0xff] %v708
        %741 = vst [vmem:[#allocation2 + $0x40] sm:$0xff] %v709
        %742 = vst [vmem:[#allocation2 + $0x48] sm:$0xff] %v710
        %743 = vst [vmem:[#allocation2 + $0x50] sm:$0xff] %v711
        %744 = vst [vmem:[#allocation2 + $0x58] sm:$0xff] %v712
        %745 = vst [vmem:[#allocation2 + $0x60] sm:$0xff] %v713
        %746 = vst [vmem:[#allocation2 + $0x68] sm:$0xff] %v714
        %747 = vst [vmem:[#allocation2 + $0x70] sm:$0xff] %v715
        %748 = vst [vmem:[#allocation2 + $0x78] sm:$0xff] %v716
        %749 = vst [vmem:[#allocation2 + $0x80] sm:$0xff] %v717
        %750 = vst [vmem:[#allocation2 + $0x88] sm:$0xff] %v718
        %751 = vst [vmem:[#allocation2 + $0x90] sm:$0xff] %v719
        %752 = vst [vmem:[#allocation2 + $0x98] sm:$0xff] %v720
        %753 = vst [vmem:[#allocation2 + $0xa0] sm:$0xff] %v721
        %754 = vst [vmem:[#allocation2 + $0xa8] sm:$0xff] %v722
        %755 = vst [vmem:[#allocation2 + $0xb0] sm:$0xff] %v723
        %756 = vst [vmem:[#allocation2 + $0xb8] sm:$0xff] %v724
        %757 = vst [vmem:[#allocation2 + $0xc0] sm:$0xff] %v725
        %758 = vst [vmem:[#allocation2 + $0xc8] sm:$0xff] %v726
        %759 = vst [vmem:[#allocation2 + $0xd0] sm:$0xff] %v727
        %760 = vst [vmem:[#allocation2 + $0xd8] sm:$0xff] %v728
        %761 = vst [vmem:[#allocation2 + $0xe0] sm:$0xff] %v729
        %762 = vst [vmem:[#allocation2 + $0xe8] sm:$0xff] %v730
        %763 = vst [vmem:[#allocation2 + $0xf0] sm:$0xff] %v731
        %764 = vst [vmem:[#allocation2 + $0xf8] sm:$0xff] %v732
        %p765 = scmp.eq.s32.totalorder %s30, 10
        // Predicated region
        $region49: #{tpu_custom_call.1} parent=31 // pred_check
          %p766 = pneg %p765
        $region50: #{tpu_custom_call.1} parent=31 // pred_check_branch
          %768 = sbr.rel (%p766) target = $region52
        $region51: #{tpu_custom_call.1} parent=31 // pred_region
          %v769 = vld [vmem:[#allocation2] sm:$0xff]
          %v770 = vld [vmem:[#allocation2 + $0x8] sm:$0xff]
          %v771 = vld [vmem:[#allocation2 + $0x10] sm:$0xff]
          %v772 = vld [vmem:[#allocation2 + $0x18] sm:$0xff]
          %v773 = vld [vmem:[#allocation2 + $0x20] sm:$0xff]
          %v774 = vld [vmem:[#allocation2 + $0x28] sm:$0xff]
          %v775 = vld [vmem:[#allocation2 + $0x30] sm:$0xff]
          %v776 = vld [vmem:[#allocation2 + $0x38] sm:$0xff]
          %v777 = vld [vmem:[#allocation2 + $0x40] sm:$0xff]
          %v778 = vld [vmem:[#allocation2 + $0x48] sm:$0xff]
          %v779 = vld [vmem:[#allocation2 + $0x50] sm:$0xff]
          %v780 = vld [vmem:[#allocation2 + $0x58] sm:$0xff]
          %v781 = vld [vmem:[#allocation2 + $0x60] sm:$0xff]
          %v782 = vld [vmem:[#allocation2 + $0x68] sm:$0xff]
          %v783 = vld [vmem:[#allocation2 + $0x70] sm:$0xff]
          %v784 = vld [vmem:[#allocation2 + $0x78] sm:$0xff]
          %v785 = vld [vmem:[#allocation2 + $0x80] sm:$0xff]
          %v786 = vld [vmem:[#allocation2 + $0x88] sm:$0xff]
          %v787 = vld [vmem:[#allocation2 + $0x90] sm:$0xff]
          %v788 = vld [vmem:[#allocation2 + $0x98] sm:$0xff]
          %v789 = vld [vmem:[#allocation2 + $0xa0] sm:$0xff]
          %v790 = vld [vmem:[#allocation2 + $0xa8] sm:$0xff]
          %v791 = vld [vmem:[#allocation2 + $0xb0] sm:$0xff]
          %v792 = vld [vmem:[#allocation2 + $0xb8] sm:$0xff]
          %v793 = vld [vmem:[#allocation2 + $0xc0] sm:$0xff]
          %v794 = vld [vmem:[#allocation2 + $0xc8] sm:$0xff]
          %v795 = vld [vmem:[#allocation2 + $0xd0] sm:$0xff]
          %v796 = vld [vmem:[#allocation2 + $0xd8] sm:$0xff]
          %v797 = vld [vmem:[#allocation2 + $0xe0] sm:$0xff]
          %v798 = vld [vmem:[#allocation2 + $0xe8] sm:$0xff]
          %v799 = vld [vmem:[#allocation2 + $0xf0] sm:$0xff]
          %v800 = vld [vmem:[#allocation2 + $0xf8] sm:$0xff]
          %v801 = vld [vmem:[#allocation8] sm:$0x1]
          %v803 = vlaneseq
          %v804 = vshrl.u32 %v803, 7
          %v805 = vsub.s32 0, %v804
          %v806 = vrot.slane %v801, %v805
          %v808 = vadd.f32 %v769, %v806
          %v809 = vadd.f32 %v770, %v806
          %v810 = vadd.f32 %v771, %v806
          %v811 = vadd.f32 %v772, %v806
          %v812 = vadd.f32 %v773, %v806
          %v813 = vadd.f32 %v774, %v806
          %v814 = vadd.f32 %v775, %v806
          %v815 = vadd.f32 %v776, %v806
          %v816 = vadd.f32 %v777, %v806
          %v817 = vadd.f32 %v778, %v806
          %v818 = vadd.f32 %v779, %v806
          %v819 = vadd.f32 %v780, %v806
          %v820 = vadd.f32 %v781, %v806
          %v821 = vadd.f32 %v782, %v806
          %v822 = vadd.f32 %v783, %v806
          %v823 = vadd.f32 %v784, %v806
          %v824 = vadd.f32 %v785, %v806
          %v825 = vadd.f32 %v786, %v806
          %v826 = vadd.f32 %v787, %v806
          %v827 = vadd.f32 %v788, %v806
          %v828 = vadd.f32 %v789, %v806
          %v829 = vadd.f32 %v790, %v806
          %v830 = vadd.f32 %v791, %v806
          %v831 = vadd.f32 %v792, %v806
          %v832 = vadd.f32 %v793, %v806
          %v833 = vadd.f32 %v794, %v806
          %v834 = vadd.f32 %v795, %v806
          %v835 = vadd.f32 %v796, %v806
          %v836 = vadd.f32 %v797, %v806
          %v837 = vadd.f32 %v798, %v806
          %v838 = vadd.f32 %v799, %v806
          %v839 = vadd.f32 %v800, %v806
          %840 = vst [vmem:[%s275] sm:$0xff] %v808
          %841 = vst [vmem:[%s275 + $0x8] sm:$0xff] %v809
          %842 = vst [vmem:[%s275 + $0x10] sm:$0xff] %v810
          %843 = vst [vmem:[%s275 + $0x18] sm:$0xff] %v811
          %844 = vst [vmem:[%s275 + $0x20] sm:$0xff] %v812
          %845 = vst [vmem:[%s275 + $0x28] sm:$0xff] %v813
          %846 = vst [vmem:[%s275 + $0x30] sm:$0xff] %v814
          %847 = vst [vmem:[%s275 + $0x38] sm:$0xff] %v815
          %848 = vst [vmem:[%s275 + $0x40] sm:$0xff] %v816
          %849 = vst [vmem:[%s275 + $0x48] sm:$0xff] %v817
          %850 = vst [vmem:[%s275 + $0x50] sm:$0xff] %v818
          %851 = vst [vmem:[%s275 + $0x58] sm:$0xff] %v819
          %852 = vst [vmem:[%s275 + $0x60] sm:$0xff] %v820
          %853 = vst [vmem:[%s275 + $0x68] sm:$0xff] %v821
          %854 = vst [vmem:[%s275 + $0x70] sm:$0xff] %v822
          %855 = vst [vmem:[%s275 + $0x78] sm:$0xff] %v823
          %856 = vst [vmem:[%s275 + $0x80] sm:$0xff] %v824
          %857 = vst [vmem:[%s275 + $0x88] sm:$0xff] %v825
          %858 = vst [vmem:[%s275 + $0x90] sm:$0xff] %v826
          %859 = vst [vmem:[%s275 + $0x98] sm:$0xff] %v827
          %860 = vst [vmem:[%s275 + $0xa0] sm:$0xff] %v828
          %861 = vst [vmem:[%s275 + $0xa8] sm:$0xff] %v829
          %862 = vst [vmem:[%s275 + $0xb0] sm:$0xff] %v830
          %863 = vst [vmem:[%s275 + $0xb8] sm:$0xff] %v831
          %864 = vst [vmem:[%s275 + $0xc0] sm:$0xff] %v832
          %865 = vst [vmem:[%s275 + $0xc8] sm:$0xff] %v833
          %866 = vst [vmem:[%s275 + $0xd0] sm:$0xff] %v834
          %867 = vst [vmem:[%s275 + $0xd8] sm:$0xff] %v835
          %868 = vst [vmem:[%s275 + $0xe0] sm:$0xff] %v836
          %869 = vst [vmem:[%s275 + $0xe8] sm:$0xff] %v837
          %870 = vst [vmem:[%s275 + $0xf0] sm:$0xff] %v838
          %871 = vst [vmem:[%s275 + $0xf8] sm:$0xff] %v839
        $region52: #{tpu_custom_call.1} parent=31 // pred_fallthru
          _
        %s872 = sand.u32 %s134, 1
        %s873 = scalar_lea.sflag [#allocation5], %s872
        %s874 = sand.u32 %s134, 1
        %s875 = smul.addr %s874, 256
        %s876 = scalar_lea.vmem [#allocation9], %s875
        // Predicated region
        $region53: #{tpu_custom_call.1} parent=31 // pred_check
          %p877 = pneg %p144
        $region54: #{tpu_custom_call.1} parent=31 // pred_check_branch
          %879 = sbr.rel (%p877) target = $region56
        $region55: #{tpu_custom_call.1} parent=31 // pred_region
          %s880 = smul.u32 32, %s28
          %s882 = ssub.s32 4096, 4096
          %883 = vsyncadd %s873, %s882
          %s884 = sadd.s32 %s29, %s880
          %s885 = smul.addr %s884, 128
          %s886 = scalar_lea.hbm %s3, %s885
          %s887 = sshll.u32 %s876, 4
          %s888 = int_to_ptr.vmem [resolvable:$true] %s887
          %893 = dma.vmem_to_hbm [thread:$0]  %s888, 4096, %s886, %s873, 128, 128, 8
        $region56: #{tpu_custom_call.1} parent=31 // pred_fallthru
          _
      $region32: #{tpu_custom_call.1} parent=5 // pred_fallthru
        _
      %p894 = scmp.le.s32.totalorder 2, %s18
      // Predicated region
      $region57: #{tpu_custom_call.1} parent=5 // pred_check
        %p895 = pneg %p894
      $region58: #{tpu_custom_call.1} parent=5 // pred_check_branch
        %897 = sbr.rel (%p895) target = $region60
      $region59: #{tpu_custom_call.1} parent=5 // pred_region
        %s898 = ssub.s32 %s18, 2
        // Predicated region
        $region61: #{tpu_custom_call.1} parent=59 // pred_check
          %p899 = pneg %p150
        $region62: #{tpu_custom_call.1} parent=59 // pred_check_branch
          %901 = sbr.rel (%p899) target = $region64
        $region63: #{tpu_custom_call.1} parent=59 // pred_region
          %s902 = sand.u32 %s135, 1
          %s903 = scalar_lea.sflag [#allocation5], %s902
          %s904 = sand.u32 %s135, 1
          %s905 = smul.addr %s904, 256
          %s906 = scalar_lea.vmem [#allocation9], %s905
          %907 = dma.done %s903, 4096
        $region64: #{tpu_custom_call.1} parent=59 // pred_fallthru
          _
      $region60: #{tpu_custom_call.1} parent=5 // pred_fallthru
        _
    $region6: #{tpu_custom_call.1} parent=1 // loop_footer
      %s22 = sadd.s32 1, %s18
    $region7: #{tpu_custom_call.1} parent=1 // loop_footer_branch
      %17 = sbr.rel target = $region3
    $region8: #{tpu_custom_call.1} parent=1 // loop_exit
      _
    %908 = vsyncpa [#allocation4], 1
    %s909 = scalar_lea.sflag [#allocation4], 1
    %910 = vsyncpa %s909, 1
    %911 = vsyncpa [#allocation7], 1
    %s912 = scalar_lea.sflag [#allocation7], 1
    %913 = vsyncpa %s912, 1
    %914 = vsyncpa [#allocation5], 1
    %s915 = scalar_lea.sflag [#allocation5], 1
    %916 = vsyncpa %s915, 1

</llo_original>
